<compile_context>
chip_gen: v5e
topology: v5e:2x2
jax: 0.10.0
libtpu: 0.0.40
codegen_flags: <defaults>
</compile_context>

<pallas_src>
import jax
import jax.numpy as jnp
from jax.experimental import pallas as pl
from jax.experimental.pallas import tpu as pltpu


def _round_up(x, m):
    return ((x + m - 1) // m) * m


def sender_fc_tanh_kernel(x_ref, w_ref, b_ref, o_ref):
    # x_ref: (TB, F)  w_ref: (F, Hp)  b_ref: (1, Hp)  o_ref: (TB, Hp)
    acc = jnp.dot(x_ref[...], w_ref[...], preferred_element_type=jnp.float32)
    acc = acc + b_ref[...]                      # f32 bias broadcast over rows
    o_ref[...] = jnp.tanh(acc).astype(o_ref.dtype)


def sender_forward(x, w, b, *, block_b=128, mxu_input_dtype=None):
    """Pallas implementation of Sender.forward (images=False).

    x: (B, F) float32
    w: (F, H) float32   (transposed nn.Linear weight)
    b: (H,)   float32
    mxu_input_dtype: optionally cast x/w to e.g. jnp.bfloat16 for the MXU
                     (accumulation stays f32). Default None keeps full f32.
    returns: (B, H) float32
    """
    B, F = x.shape
    F2, H = w.shape
    assert F == F2, "feature dims must match"
    out_dtype = x.dtype

    # Sublane-dense batch tiling: pad B to a multiple of 8 and tile at most
    # block_b rows per grid step (amortizes per-step overhead, fills MXU rows).
    if B >= block_b:
        TB = block_b
        Bp = _round_up(B, TB)
    else:
        TB = Bp = _round_up(B, 8)
    # Lane-dense output columns: pad H to a multiple of 128 (unmasked vst).
    Hp = _round_up(H, 128)

    xp = x if Bp == B else jnp.pad(x, ((0, Bp - B), (0, 0)))
    wp = w if Hp == H else jnp.pad(w, ((0, 0), (0, Hp - H)))
    bp = (b if Hp == H else jnp.pad(b, (0, Hp - H))).reshape(1, Hp).astype(jnp.float32)

    if mxu_input_dtype is not None:
        xp = xp.astype(mxu_input_dtype)
        wp = wp.astype(mxu_input_dtype)

    cost = pl.CostEstimate(
        flops=2 * Bp * F * Hp,
        transcendentals=Bp * Hp,
        bytes_accessed=int(
            xp.size * xp.dtype.itemsize
            + wp.size * wp.dtype.itemsize
            + bp.size * bp.dtype.itemsize
            + Bp * Hp * jnp.dtype(out_dtype).itemsize
        ),
    )

    out_p = pl.pallas_call(
        sender_fc_tanh_kernel,
        out_shape=jax.ShapeDtypeStruct((Bp, Hp), out_dtype),
        grid=(Bp // TB,),
        in_specs=[
            pl.BlockSpec((TB, F), lambda i: (i, 0)),   # batch-tiled activations
            pl.BlockSpec((F, Hp), lambda i: (0, 0)),   # weight resident across grid
            pl.BlockSpec((1, Hp), lambda i: (0, 0)),   # bias resident across grid
        ],
        out_specs=pl.BlockSpec((TB, Hp), lambda i: (i, 0)),
        compiler_params=pltpu.CompilerParams(
            dimension_semantics=("parallel",),         # shard batch tiles on v7x's 2 TCs
        ),
        cost_estimate=cost,
    )(xp, wp, bp)

    return out_p[:B, :H]


if __name__ == "__main__":
    # Module hyper-params (images=False): Sender(n_features, n_hidden, images=False)
    batch = 2
    n_features = 16
    n_hidden = 32

    key = jax.random.PRNGKey(0)
    kx, kw, kb, kx2 = jax.random.split(key, 4)

    # Deterministic parameter init mimicking nn.Linear's uniform(-1/sqrt(F), 1/sqrt(F)).
    bound = 1.0 / (n_features ** 0.5)
    w = jax.random.uniform(kw, (n_features, n_hidden), jnp.float32, -bound, bound)
    b = jax.random.uniform(kb, (n_hidden,), jnp.float32, -bound, bound)

    # --- small-batch path (B padded 2 -> 8, H padded 32 -> 128, single grid step)
    x = jax.random.normal(kx, (batch, n_features), jnp.float32)
    out = jax.block_until_ready(sender_forward(x, w, b))
    ref = jnp.tanh(x @ w + b)
    assert out.shape == (batch, n_hidden)
    assert jnp.allclose(out, ref, atol=1e-5, rtol=1e-5)

    # --- batched path exercising the grid over B + bf16 MXU inputs (v6e/v7x lever)
    big_batch = 256
    x2 = jax.random.normal(kx2, (big_batch, n_features), jnp.float32)
    out2 = jax.block_until_ready(
        sender_forward(x2, w, b, mxu_input_dtype=jnp.bfloat16)
    )
    ref2 = jnp.tanh(x2 @ w + b)
    assert out2.shape == (big_batch, n_hidden)
    assert jnp.allclose(out2, ref2, atol=2e-2, rtol=2e-2)   # bf16 MXU inputs

    print("KERNEL_OK")
</pallas_src>

<mosaic_0001>
module attributes {stable_mosaic.version = 11 : i64} {
  func.func @sender_fc_tanh_kernel(%arg0: i32, %arg1: memref<8x16xf32, #tpu.memory_space<vmem>>, %arg2: memref<16x128xf32, #tpu.memory_space<vmem>>, %arg3: memref<1x128xf32, #tpu.memory_space<vmem>>, %arg4: memref<8x128xf32, #tpu.memory_space<vmem>>) attributes {dimension_semantics = [#tpu.dimension_semantics<parallel>], iteration_bounds = array<i64: 1>, scalar_prefetch = 0 : i64, scratch_operands = 0 : i64, tpu.core_type = #tpu.core_type<tc>, window_params = [{transform_indices = @transform_0, window_bounds = array<i64: 8, 16>}, {pipeline_mode = #tpu.pipeline_mode<synchronous>, transform_indices = @transform_1, window_bounds = array<i64: 16, 128>}, {pipeline_mode = #tpu.pipeline_mode<synchronous>, transform_indices = @transform_2, window_bounds = array<i64: 1, 128>}, {transform_indices = @transform_3, window_bounds = array<i64: 8, 128>}]} {
    %c0 = arith.constant 0 : index
    %c0_0 = arith.constant 0 : index
    %0 = vector.load %arg1[%c0, %c0_0] : memref<8x16xf32, #tpu.memory_space<vmem>>, vector<8x16xf32>
    %c0_1 = arith.constant 0 : index
    %c0_2 = arith.constant 0 : index
    %1 = vector.load %arg2[%c0_1, %c0_2] : memref<16x128xf32, #tpu.memory_space<vmem>>, vector<16x128xf32>
    %cst = arith.constant dense<0.000000e+00> : vector<8x128xf32>
    %2 = tpu.matmul %0, %1, %cst {dimension_numbers = #tpu.dot_dimension_numbers<[1], [0], [0], [1], [0, 0, 1, 1], [], []>} : vector<8x16xf32>, vector<16x128xf32>, vector<8x128xf32> -> vector<8x128xf32>
    %c0_3 = arith.constant 0 : index
    %c0_4 = arith.constant 0 : index
    %3 = vector.load %arg3[%c0_3, %c0_4] : memref<1x128xf32, #tpu.memory_space<vmem>>, vector<1x128xf32>
    %4 = vector.broadcast %3 : vector<1x128xf32> to vector<8x128xf32>
    %5 = arith.addf %2, %4 : vector<8x128xf32>
    %6 = math.tanh %5 : vector<8x128xf32>
    %c0_5 = arith.constant 0 : index
    %c0_6 = arith.constant 0 : index
    %7 = vector.load %arg4[%c0_5, %c0_6] : memref<8x128xf32, #tpu.memory_space<vmem>>, vector<8x128xf32>
    tpu.vector_store %arg4[%c0_5, %c0_6], %6 {strides = array<i32>} : memref<8x128xf32, #tpu.memory_space<vmem>>, vector<8x128xf32>,
    return
  }
  func.func @transform_0(%arg0: i32) -> (i32, i32) {
    %c0_i32 = arith.constant 0 : i32
    %c0_i32_0 = arith.constant 0 : i32
    return %arg0, %c0_i32 : i32, i32
  }
  func.func @transform_1(%arg0: i32) -> (i32, i32) {
    %c0_i32 = arith.constant 0 : i32
    %c0_i32_0 = arith.constant 0 : i32
    %c0_i32_1 = arith.constant 0 : i32
    return %c0_i32, %c0_i32_0 : i32, i32
  }
  func.func @transform_2(%arg0: i32) -> (i32, i32) {
    %c0_i32 = arith.constant 0 : i32
    %c0_i32_0 = arith.constant 0 : i32
    %c0_i32_1 = arith.constant 0 : i32
    return %c0_i32, %c0_i32_0 : i32, i32
  }
  func.func @transform_3(%arg0: i32) -> (i32, i32) {
    %c0_i32 = arith.constant 0 : i32
    %c0_i32_0 = arith.constant 0 : i32
    return %arg0, %c0_i32 : i32, i32
  }
}

</mosaic_0001>

<llo_original>
// kernel: tpu_custom_call.1
$region0: #{tpu_custom_call.1}
  #allocation0 [shape = 'u32[]', space=smem, size = 0x4, offset = 0x4, fixed_abs, tag = 'smem constant byte address 0x4 - core index']
  #allocation1 [shape = 'u32[72,128]{1,0:T(1,128)}', space=vmem, size = 0x9000, scoped, tag = 'internal scratch']
  %s0 = inlined_call_operand.hbm [shape: f32[8,16], index: 0, kind: input, shape index: {}]
  %s1 = inlined_call_operand.hbm [shape: f32[16,128], index: 1, kind: input, shape index: {}]
  %s2 = inlined_call_operand.vmem [shape: f32[1,128], index: 2, kind: input, shape index: {}]
  %s3 = inlined_call_operand.hbm [shape: f32[8,128], index: 3, kind: output, shape index: {}]
  %s4 = sld [smem:[#allocation0]]
  $region30: #{tpu_custom_call.1} parent=0
    _
  %s6 = ssub.s32 1, %s4
  %s7 = scalar_select 0, %s6, %s4
  $region1: #{tpu_custom_call.1} parent=0
    #allocation2 [shape = 'u8[4096]{0}', space=vmem, size = 0x1000, scoped, tag = 'input window, operand 0, single buffered']
    #allocation3 [shape = 's32[1]{0}', space=sflag, size = 0x4, scoped, tag = 'scoped memory for tpu_custom_call.1']
    #allocation4 [shape = 's32[1]{0}', space=sflag, size = 0x4, scoped, tag = 'scoped memory for tpu_custom_call.1']
    #allocation5 [shape = 'u8[8192]{0}', space=vmem, size = 0x2000, scoped, tag = 'input window, operand 1, single buffered']
    #allocation6 [shape = 's32[1]{0}', space=sflag, size = 0x4, scoped, tag = 'scoped memory for tpu_custom_call.1']
    #allocation7 [shape = 'u8[4096]{0}', space=vmem, size = 0x1000, scoped, tag = 'output window, operand 0, single buffered']
    %8 = vsyncpa [#allocation3], 0
    %9 = vsyncpa [#allocation6], 0
    %10 = vsyncpa [#allocation4], 0
    // Predicated region
    $region2: #{tpu_custom_call.1} parent=1 // pred_check
      _
    $region3: #{tpu_custom_call.1} parent=1 // pred_check_branch
      %12 = sbr.rel (0) target = $region5
    $region4: #{tpu_custom_call.1} parent=1 // pred_region
      %14 = vsyncadd [#allocation3], 0
      %s16 = sshll.u32 %s0, 4
      %s17 = int_to_ptr.hbm [resolvable:$true] %s16
      %s18 = sshll.u32 [#allocation2], 4
      %s19 = int_to_ptr.vmem [resolvable:$true] %s18
      %21 = dma.hbm_to_vmem [thread:$0]  %s17, 128, %s19, [#allocation3]
    $region5: #{tpu_custom_call.1} parent=1 // pred_fallthru
      _
    // Predicated region
    $region6: #{tpu_custom_call.1} parent=1 // pred_check
      _
    $region7: #{tpu_custom_call.1} parent=1 // pred_check_branch
      %23 = sbr.rel (0) target = $region9
    $region8: #{tpu_custom_call.1} parent=1 // pred_region
      %25 = vsyncadd [#allocation6], 0
      %s26 = sshll.u32 %s1, 4
      %s27 = int_to_ptr.hbm [resolvable:$true] %s26
      %s28 = sshll.u32 [#allocation5], 4
      %s29 = int_to_ptr.vmem [resolvable:$true] %s28
      %34 = dma.hbm_to_vmem [thread:$0]  %s27, 256, %s29, [#allocation6], 128, 128, 8
    $region9: #{tpu_custom_call.1} parent=1 // pred_fallthru
      _
    // Predicated region
    $region10: #{tpu_custom_call.1} parent=1 // pred_check
      _
    $region11: #{tpu_custom_call.1} parent=1 // pred_check_branch
      %36 = sbr.rel (0) target = $region13
    $region12: #{tpu_custom_call.1} parent=1 // pred_region
      _
    $region13: #{tpu_custom_call.1} parent=1 // pred_fallthru
      _
    // Predicated region
    $region14: #{tpu_custom_call.1} parent=1 // pred_check
      _
    $region15: #{tpu_custom_call.1} parent=1 // pred_check_branch
      %38 = sbr.rel (0) target = $region17
    $region16: #{tpu_custom_call.1} parent=1 // pred_region
      %40 = dma.done [#allocation3], 128
    $region17: #{tpu_custom_call.1} parent=1 // pred_fallthru
      _
    // Predicated region
    $region18: #{tpu_custom_call.1} parent=1 // pred_check
      _
    $region19: #{tpu_custom_call.1} parent=1 // pred_check_branch
      %42 = sbr.rel (0) target = $region21
    $region20: #{tpu_custom_call.1} parent=1 // pred_region
      %44 = dma.done [#allocation6], 256
    $region21: #{tpu_custom_call.1} parent=1 // pred_fallthru
      _
    %v45 = vld [vmem:[#allocation2] sm:$0xff]
    %v46 = vld [vmem:[#allocation5] sm:$0xff]
    %v47 = vld [vmem:[#allocation5 + $0x8] sm:$0xff]
    %v48 = vld [vmem:[%s2] sm:$0x1]
    %v50 = vperm.slane %v48, 0
    %vm52 = vcmask 130048
    %v54 = vsel %vm52, %v45, 0
    %56 = vmatpush.msra.mxu0 0.0
    %57 = vmatpush.msra.mxu0 0.0
    %58 = vmatpush.msra.mxu0 0.0
    %59 = vmatpush.msra.mxu0 0.0
    %60 = vmatpush.msra.mxu0 0.0
    %61 = vmatpush.msra.mxu0 0.0
    %62 = vmatpush.msra.mxu0 0.0
    %63 = vmatpush.msra.mxu0 0.0
    %64 = vmatpush.msra.mxu0 0.0
    %65 = vmatpush.msra.mxu0 0.0
    %66 = vmatpush.msra.mxu0 0.0
    %67 = vmatpush.msra.mxu0 0.0
    %68 = vmatpush.msra.mxu0 0.0
    %69 = vmatpush.msra.mxu0 0.0
    %70 = vmatpush.msra.mxu0 %v47
    %71 = vmatpush.msra.mxu0 %v46
    %72 = vmatmul.f32.gmra.mxu0 %v54
    %v73 = vpop.f32.mrf.mxu0
    %v74 = vadd.f32 %v50, %v73
    %75 = vdwg.mxu0
    %v76 = vtanh.pop %v74
    %77 = vst [vmem:[#allocation7] sm:$0xff] %v76
    // Predicated region
    $region22: #{tpu_custom_call.1} parent=1 // pred_check
      _
    $region23: #{tpu_custom_call.1} parent=1 // pred_check_branch
      %79 = sbr.rel (0) target = $region25
    $region24: #{tpu_custom_call.1} parent=1 // pred_region
      %81 = vsyncadd [#allocation4], 0
      %s83 = sshll.u32 [#allocation7], 4
      %s84 = int_to_ptr.vmem [resolvable:$true] %s83
      %s85 = sshll.u32 %s3, 4
      %s86 = int_to_ptr.hbm [resolvable:$true] %s85
      %88 = dma.vmem_to_hbm [thread:$0]  %s84, 128, %s86, [#allocation4]
    $region25: #{tpu_custom_call.1} parent=1 // pred_fallthru
      _
    // Predicated region
    $region26: #{tpu_custom_call.1} parent=1 // pred_check
      _
    $region27: #{tpu_custom_call.1} parent=1 // pred_check_branch
      %90 = sbr.rel (0) target = $region29
    $region28: #{tpu_custom_call.1} parent=1 // pred_region
      %92 = dma.done [#allocation4], 128
    $region29: #{tpu_custom_call.1} parent=1 // pred_fallthru
      _
    %93 = vsyncpa [#allocation3], 1
    %94 = vsyncpa [#allocation6], 1
    %95 = vsyncpa [#allocation4], 1

</llo_original>
